<compile_context>
chip_gen: v5e
topology: v5e:2x2
jax: 0.10.0
libtpu: 0.0.40
codegen_flags: <defaults>
</compile_context>

<pallas_src>
import jax
import jax.numpy as jnp
from jax import lax
from jax.experimental import pallas as pl
from jax.experimental.pallas import tpu as pltpu

BLOCK_B = 2048  # max batch tile (lanes); multiple of 128, ~3-4 MiB VMEM at f32


def _round_up(v, m):
    return ((v + m - 1) // m) * m


def _dimension_semantics(num_steps):
    """Batch axis semantics; genuinely core-parallel on v7x when it can split."""
    kind = jax.devices()[0].device_kind.lower()
    if "v7" in kind and num_steps >= 2 and num_steps % 2 == 0:
        return (pltpu.CORE_PARALLEL,)
    return ("parallel",)


def value_mlp_kernel(x_ref, w1t_ref, w2t_ref, w3r_ref, bias_ref, o_ref):
    # x_ref:    (b_blk, n_states)   streamed observation tile (batch on sublanes)
    # w1t_ref:  (hidden, n_states)  layer1 weight, (out, in) layout, f32
    # w2t_ref:  (hidden, hidden)    layer2 weight, (out, in) layout, bf16
    # w3r_ref:  (1, hidden)         layer3 weight row, f32
    # bias_ref: (hidden, 3)         packed columns = [b1, b2, b3 (row 0)]
    # o_ref:    (1, b_blk)          lane-dense output tile
    b1 = bias_ref[:, 0:1]          # (hidden, 1)
    b2 = bias_ref[:, 1:2]          # (hidden, 1)
    b3 = bias_ref[0:1, 2:3]        # (1, 1)

    # Layer 1: (hidden, 4) x (4, b_blk) on the MXU. Contracting both operands'
    # last dims folds the x transpose into the matmul (no wrapper transpose,
    # no in-kernel XLU transpose, frees the VALU slot).
    h1 = lax.dot_general(
        w1t_ref[...], x_ref[...],
        dimension_numbers=(((1,), (1,)), ((), ())),
        preferred_element_type=jnp.float32)              # (hidden, b_blk)
    h1 = jnp.maximum(h1 + b1, 0.0)

    # Layer 2: dense 128x128 contraction on the MXU, bf16 operands, f32 accum.
    h2 = jnp.dot(w2t_ref[...], h1.astype(jnp.bfloat16),
                 preferred_element_type=jnp.float32)      # (hidden, b_blk)
    h2 = jnp.maximum(h2 + b2, 0.0)

    # Layer 3: (1, hidden) x (hidden, b_blk) on the MXU -> already lane-dense.
    out = jnp.dot(w3r_ref[...], h2,
                  preferred_element_type=jnp.float32) + b3  # (1, b_blk)
    o_ref[...] = out.astype(o_ref.dtype)


def pack_params(w1, b1, w2, b2, w3, b3):
    """One-time repack of (in, out)-layout params into kernel operands."""
    hidden = w1.shape[1]
    w1t = jnp.asarray(w1, jnp.float32).T                       # (hidden, n_states)
    w2t = jnp.asarray(w2, jnp.float32).T.astype(jnp.bfloat16)  # (hidden, hidden) bf16
    w3row = jnp.asarray(w3, jnp.float32).T                     # (1, hidden)
    bias = jnp.zeros((hidden, 3), jnp.float32)
    bias = bias.at[:, 0].set(jnp.ravel(b1).astype(jnp.float32))
    bias = bias.at[:, 1].set(jnp.ravel(b2).astype(jnp.float32))
    bias = bias.at[0, 2].set(jnp.ravel(b3).astype(jnp.float32)[0])
    return w1t, w2t, w3row, bias


@jax.jit
def value_model_forward(x, w1t, w2t, w3row, bias):
    B, n_states = x.shape
    hidden = w1t.shape[0]
    b_blk = min(BLOCK_B, _round_up(B, 128))
    b_pad = _round_up(B, b_blk)
    num_steps = b_pad // b_blk

    # Only wrapper-side data movement: a (small) zero pad of the batch dim.
    if b_pad != B:
        x = jnp.pad(x, ((0, b_pad - B), (0, 0)))

    flops = 2 * b_pad * (n_states * hidden + hidden * hidden + hidden)
    bytes_accessed = (4 * x.size + 4 * w1t.size + 2 * w2t.size
                      + 4 * w3row.size + 4 * bias.size + 4 * b_pad)

    out = pl.pallas_call(
        value_mlp_kernel,
        out_shape=jax.ShapeDtypeStruct((1, b_pad), jnp.float32),
        grid=(num_steps,),
        in_specs=[
            pl.BlockSpec((b_blk, n_states), lambda i: (i, 0)),   # streamed x tile
            pl.BlockSpec((hidden, n_states), lambda i: (0, 0)),  # resident w1t
            pl.BlockSpec((hidden, hidden), lambda i: (0, 0)),    # resident w2t (bf16)
            pl.BlockSpec((1, hidden), lambda i: (0, 0)),         # resident w3 row
            pl.BlockSpec((hidden, 3), lambda i: (0, 0)),         # resident bias slab
        ],
        out_specs=pl.BlockSpec((1, b_blk), lambda i: (0, i)),
        compiler_params=pltpu.CompilerParams(
            dimension_semantics=_dimension_semantics(num_steps)),
        cost_estimate=pl.CostEstimate(
            flops=flops, transcendentals=0, bytes_accessed=bytes_accessed),
    )(x, w1t, w2t, w3row, bias)
    return out[0, :B].reshape(B, 1)


def init_params(key, n_states, hidden=128):
    """Deterministic init mirroring nn.Linear + kaiming_uniform_(relu)."""
    def kaiming_uniform(k, fan_in, shape):
        bound = jnp.sqrt(6.0 / fan_in)  # gain=sqrt(2), bound = gain*sqrt(3/fan_in)
        return jax.random.uniform(k, shape, jnp.float32, -bound, bound)

    def bias_init(k, fan_in, shape):
        bound = 1.0 / jnp.sqrt(fan_in)  # PyTorch default Linear bias init
        return jax.random.uniform(k, shape, jnp.float32, -bound, bound)

    ks = jax.random.split(key, 6)
    # Reference weights stored (in, out); y = x @ W + b == PyTorch x @ W.T + b.
    w1 = kaiming_uniform(ks[0], n_states, (n_states, hidden))
    b1 = bias_init(ks[1], n_states, (1, hidden))
    w2 = kaiming_uniform(ks[2], hidden, (hidden, hidden))
    b2 = bias_init(ks[3], hidden, (1, hidden))
    w3 = kaiming_uniform(ks[4], hidden, (hidden, 1))
    b3 = bias_init(ks[5], hidden, (1, 1))
    return w1, b1, w2, b2, w3, b3


if __name__ == "__main__":
    n_states = 4          # CartPole-v1 observation dim
    batch = 8

    key = jax.random.PRNGKey(0)
    k_x, k_p = jax.random.split(key)
    x = jax.random.normal(k_x, (batch, n_states), dtype=jnp.float32)
    params = init_params(k_p, n_states)
    w1, b1, w2, b2, w3, b3 = params

    # Pack weights once (amortized across RL steps in real use).
    kernel_params = pack_params(*params)

    out = value_model_forward(x, *kernel_params)
    out = jax.block_until_ready(out)

    # Pure-JAX f32 reference of the same forward semantics.
    ref = jnp.maximum(x @ w1 + b1, 0.0)
    ref = jnp.maximum(ref @ w2 + b2, 0.0)
    ref = ref @ w3 + b3
    assert out.shape == (batch, 1)
    # Tolerance loosened to cover the bf16 layer-2 matmul (f32 accumulation).
    assert jnp.allclose(out, ref, atol=5e-2, rtol=5e-2), (
        f"max abs diff {jnp.max(jnp.abs(out - ref))}")

    print("KERNEL_OK")
</pallas_src>

<mosaic_0001>
module attributes {stable_mosaic.version = 11 : i64} {
  func.func @value_mlp_kernel(%arg0: i32, %arg1: memref<128x4xf32, #tpu.memory_space<vmem>>, %arg2: memref<128x4xf32, #tpu.memory_space<vmem>>, %arg3: memref<128x128xbf16, #tpu.memory_space<vmem>>, %arg4: memref<1x128xf32, #tpu.memory_space<vmem>>, %arg5: memref<128x3xf32, #tpu.memory_space<vmem>>, %arg6: memref<1x128xf32, #tpu.memory_space<vmem>>) attributes {dimension_semantics = [#tpu.dimension_semantics<parallel>], iteration_bounds = array<i64: 1>, scalar_prefetch = 0 : i64, scratch_operands = 0 : i64, tpu.core_type = #tpu.core_type<tc>, window_params = [{transform_indices = @transform_0, window_bounds = array<i64: 128, 4>}, {pipeline_mode = #tpu.pipeline_mode<synchronous>, transform_indices = @transform_1, window_bounds = array<i64: 128, 4>}, {pipeline_mode = #tpu.pipeline_mode<synchronous>, transform_indices = @transform_2, window_bounds = array<i64: 128, 128>}, {pipeline_mode = #tpu.pipeline_mode<synchronous>, transform_indices = @transform_3, window_bounds = array<i64: 1, 128>}, {pipeline_mode = #tpu.pipeline_mode<synchronous>, transform_indices = @transform_4, window_bounds = array<i64: 128, 3>}, {transform_indices = @transform_5, window_bounds = array<i64: 1, 128>}]} {
    %c0 = arith.constant 0 : index
    %c0_0 = arith.constant 0 : index
    %0 = vector.load %arg5[%c0, %c0_0] : memref<128x3xf32, #tpu.memory_space<vmem>>, vector<128x1xf32>
    %c0_1 = arith.constant 0 : index
    %c1 = arith.constant 1 : index
    %1 = vector.load %arg5[%c0_1, %c1] : memref<128x3xf32, #tpu.memory_space<vmem>>, vector<128x1xf32>
    %c0_2 = arith.constant 0 : index
    %c2 = arith.constant 2 : index
    %2 = vector.load %arg5[%c0_2, %c2] : memref<128x3xf32, #tpu.memory_space<vmem>>, vector<1x1xf32>
    %c0_3 = arith.constant 0 : index
    %c0_4 = arith.constant 0 : index
    %3 = vector.load %arg2[%c0_3, %c0_4] : memref<128x4xf32, #tpu.memory_space<vmem>>, vector<128x4xf32>
    %c0_5 = arith.constant 0 : index
    %c0_6 = arith.constant 0 : index
    %4 = vector.load %arg1[%c0_5, %c0_6] : memref<128x4xf32, #tpu.memory_space<vmem>>, vector<128x4xf32>
    %cst = arith.constant dense<0.000000e+00> : vector<128x128xf32>
    %5 = tpu.matmul %3, %4, %cst {dimension_numbers = #tpu.dot_dimension_numbers<[1], [1], [0], [0], [0, 0, 1, 0], [], []>} : vector<128x4xf32>, vector<128x4xf32>, vector<128x128xf32> -> vector<128x128xf32>
    %6 = vector.broadcast %0 : vector<128x1xf32> to vector<128x128xf32>
    %7 = arith.addf %5, %6 : vector<128x128xf32>
    %cst_7 = arith.constant 0.000000e+00 : f32
    %8 = vector.broadcast %cst_7 : f32 to vector<128x128xf32>
    %9 = arith.maximumf %7, %8 : vector<128x128xf32>
    %c0_8 = arith.constant 0 : index
    %c0_9 = arith.constant 0 : index
    %10 = vector.load %arg3[%c0_8, %c0_9] : memref<128x128xbf16, #tpu.memory_space<vmem>>, vector<128x128xbf16>
    %11 = arith.truncf %9 : vector<128x128xf32> to vector<128x128xbf16>
    %cst_10 = arith.constant dense<0.000000e+00> : vector<128x128xf32>
    %12 = tpu.matmul %10, %11, %cst_10 {dimension_numbers = #tpu.dot_dimension_numbers<[1], [0], [0], [1], [0, 0, 1, 1], [], []>} : vector<128x128xbf16>, vector<128x128xbf16>, vector<128x128xf32> -> vector<128x128xf32>
    %13 = vector.broadcast %1 : vector<128x1xf32> to vector<128x128xf32>
    %14 = arith.addf %12, %13 : vector<128x128xf32>
    %cst_11 = arith.constant 0.000000e+00 : f32
    %15 = vector.broadcast %cst_11 : f32 to vector<128x128xf32>
    %16 = arith.maximumf %14, %15 : vector<128x128xf32>
    %c0_12 = arith.constant 0 : index
    %c0_13 = arith.constant 0 : index
    %17 = vector.load %arg4[%c0_12, %c0_13] : memref<1x128xf32, #tpu.memory_space<vmem>>, vector<1x128xf32>
    %cst_14 = arith.constant dense<0.000000e+00> : vector<1x128xf32>
    %18 = tpu.matmul %17, %16, %cst_14 {dimension_numbers = #tpu.dot_dimension_numbers<[1], [0], [0], [1], [0, 0, 1, 1], [], []>} : vector<1x128xf32>, vector<128x128xf32>, vector<1x128xf32> -> vector<1x128xf32>
    %19 = vector.broadcast %2 : vector<1x1xf32> to vector<1x128xf32>
    %20 = arith.addf %18, %19 : vector<1x128xf32>
    %c0_15 = arith.constant 0 : index
    %c0_16 = arith.constant 0 : index
    %21 = vector.load %arg6[%c0_15, %c0_16] : memref<1x128xf32, #tpu.memory_space<vmem>>, vector<1x128xf32>
    tpu.vector_store %arg6[%c0_15, %c0_16], %20 {strides = array<i32>} : memref<1x128xf32, #tpu.memory_space<vmem>>, vector<1x128xf32>,
    return
  }
  func.func @transform_0(%arg0: i32) -> (i32, i32) {
    %c0_i32 = arith.constant 0 : i32
    %c0_i32_0 = arith.constant 0 : i32
    return %arg0, %c0_i32 : i32, i32
  }
  func.func @transform_1(%arg0: i32) -> (i32, i32) {
    %c0_i32 = arith.constant 0 : i32
    %c0_i32_0 = arith.constant 0 : i32
    %c0_i32_1 = arith.constant 0 : i32
    return %c0_i32, %c0_i32_0 : i32, i32
  }
  func.func @transform_2(%arg0: i32) -> (i32, i32) {
    %c0_i32 = arith.constant 0 : i32
    %c0_i32_0 = arith.constant 0 : i32
    %c0_i32_1 = arith.constant 0 : i32
    return %c0_i32, %c0_i32_0 : i32, i32
  }
  func.func @transform_3(%arg0: i32) -> (i32, i32) {
    %c0_i32 = arith.constant 0 : i32
    %c0_i32_0 = arith.constant 0 : i32
    %c0_i32_1 = arith.constant 0 : i32
    return %c0_i32, %c0_i32_0 : i32, i32
  }
  func.func @transform_4(%arg0: i32) -> (i32, i32) {
    %c0_i32 = arith.constant 0 : i32
    %c0_i32_0 = arith.constant 0 : i32
    %c0_i32_1 = arith.constant 0 : i32
    return %c0_i32, %c0_i32_0 : i32, i32
  }
  func.func @transform_5(%arg0: i32) -> (i32, i32) {
    %c0_i32 = arith.constant 0 : i32
    %c0_i32_0 = arith.constant 0 : i32
    return %c0_i32, %arg0 : i32, i32
  }
}

</mosaic_0001>

<llo_original>
// kernel: value_model_forward.1
$region0: #{value_model_forward.1}
  #allocation0 [shape = 'u32[]', space=smem, size = 0x4, offset = 0x4, fixed_abs, tag = 'smem constant byte address 0x4 - core index']
  #allocation1 [shape = 'u32[72,128]{1,0:T(1,128)}', space=vmem, size = 0x9000, scoped, tag = 'internal scratch']
  %s0 = inlined_call_operand.vmem [shape: f32[128,4], index: 0, kind: input, shape index: {}]
  %s1 = inlined_call_operand.vmem [shape: f32[128,4], index: 1, kind: input, shape index: {}]
  %s2 = inlined_call_operand.vmem [shape: bf16[128,128], index: 2, kind: input, shape index: {}]
  %s3 = inlined_call_operand.vmem [shape: f32[1,128], index: 3, kind: input, shape index: {}]
  %s4 = inlined_call_operand.vmem [shape: f32[128,3], index: 4, kind: input, shape index: {}]
  %s5 = inlined_call_operand.vmem [shape: f32[1,128], index: 5, kind: output, shape index: {}]
  %s6 = sld [smem:[#allocation0]]
  $region30: #{value_model_forward.1} parent=0
    _
  %s8 = ssub.s32 1, %s6
  %s9 = scalar_select 0, %s8, %s6
  // Predicated region
  $region2: #{value_model_forward.1} parent=0 // pred_check
    _
  $region3: #{value_model_forward.1} parent=0 // pred_check_branch
    %11 = sbr.rel (0) target = $region5
  $region4: #{value_model_forward.1} parent=0 // pred_region
    _
  $region5: #{value_model_forward.1} parent=0 // pred_fallthru
    _
  // Predicated region
  $region6: #{value_model_forward.1} parent=0 // pred_check
    _
  $region7: #{value_model_forward.1} parent=0 // pred_check_branch
    %13 = sbr.rel (0) target = $region9
  $region8: #{value_model_forward.1} parent=0 // pred_region
    _
  $region9: #{value_model_forward.1} parent=0 // pred_fallthru
    _
  // Predicated region
  $region10: #{value_model_forward.1} parent=0 // pred_check
    _
  $region11: #{value_model_forward.1} parent=0 // pred_check_branch
    %15 = sbr.rel (0) target = $region13
  $region12: #{value_model_forward.1} parent=0 // pred_region
    _
  $region13: #{value_model_forward.1} parent=0 // pred_fallthru
    _
  // Predicated region
  $region14: #{value_model_forward.1} parent=0 // pred_check
    _
  $region15: #{value_model_forward.1} parent=0 // pred_check_branch
    %17 = sbr.rel (0) target = $region17
  $region16: #{value_model_forward.1} parent=0 // pred_region
    _
  $region17: #{value_model_forward.1} parent=0 // pred_fallthru
    _
  // Predicated region
  $region18: #{value_model_forward.1} parent=0 // pred_check
    _
  $region19: #{value_model_forward.1} parent=0 // pred_check_branch
    %19 = sbr.rel (0) target = $region21
  $region20: #{value_model_forward.1} parent=0 // pred_region
    _
  $region21: #{value_model_forward.1} parent=0 // pred_fallthru
    _
  %v20 = vld [vmem:[%s4] sm:$0xff]
  %v21 = vld [vmem:[%s4 + $0x8] sm:$0xff]
  %v22 = vld [vmem:[%s4 + $0x10] sm:$0xff]
  %v23 = vld [vmem:[%s4 + $0x18] sm:$0xff]
  %v24 = vld [vmem:[%s4 + $0x20] sm:$0xff]
  %v25 = vld [vmem:[%s4 + $0x28] sm:$0xff]
  %v26 = vld [vmem:[%s4 + $0x30] sm:$0xff]
  %v27 = vld [vmem:[%s4 + $0x38] sm:$0xff]
  %v28 = vld [vmem:[%s4 + $0x40] sm:$0xff]
  %v29 = vld [vmem:[%s4 + $0x48] sm:$0xff]
  %v30 = vld [vmem:[%s4 + $0x50] sm:$0xff]
  %v31 = vld [vmem:[%s4 + $0x58] sm:$0xff]
  %v32 = vld [vmem:[%s4 + $0x60] sm:$0xff]
  %v33 = vld [vmem:[%s4 + $0x68] sm:$0xff]
  %v34 = vld [vmem:[%s4 + $0x70] sm:$0xff]
  %v35 = vld [vmem:[%s4 + $0x78] sm:$0xff]
  %v36 = vld [vmem:[%s4] sm:$0x1]
  %v37 = vld [vmem:[%s1] sm:$0xff]
  %v38 = vld [vmem:[%s1 + $0x8] sm:$0xff]
  %v39 = vld [vmem:[%s1 + $0x10] sm:$0xff]
  %v40 = vld [vmem:[%s1 + $0x18] sm:$0xff]
  %v41 = vld [vmem:[%s1 + $0x20] sm:$0xff]
  %v42 = vld [vmem:[%s1 + $0x28] sm:$0xff]
  %v43 = vld [vmem:[%s1 + $0x30] sm:$0xff]
  %v44 = vld [vmem:[%s1 + $0x38] sm:$0xff]
  %v45 = vld [vmem:[%s1 + $0x40] sm:$0xff]
  %v46 = vld [vmem:[%s1 + $0x48] sm:$0xff]
  %v47 = vld [vmem:[%s1 + $0x50] sm:$0xff]
  %v48 = vld [vmem:[%s1 + $0x58] sm:$0xff]
  %v49 = vld [vmem:[%s1 + $0x60] sm:$0xff]
  %v50 = vld [vmem:[%s1 + $0x68] sm:$0xff]
  %v51 = vld [vmem:[%s1 + $0x70] sm:$0xff]
  %v52 = vld [vmem:[%s1 + $0x78] sm:$0xff]
  %v53 = vld [vmem:[%s0] sm:$0xff]
  %v54 = vld [vmem:[%s0 + $0x8] sm:$0xff]
  %v55 = vld [vmem:[%s0 + $0x10] sm:$0xff]
  %v56 = vld [vmem:[%s0 + $0x18] sm:$0xff]
  %v57 = vld [vmem:[%s0 + $0x20] sm:$0xff]
  %v58 = vld [vmem:[%s0 + $0x28] sm:$0xff]
  %v59 = vld [vmem:[%s0 + $0x30] sm:$0xff]
  %v60 = vld [vmem:[%s0 + $0x38] sm:$0xff]
  %v61 = vld [vmem:[%s0 + $0x40] sm:$0xff]
  %v62 = vld [vmem:[%s0 + $0x48] sm:$0xff]
  %v63 = vld [vmem:[%s0 + $0x50] sm:$0xff]
  %v64 = vld [vmem:[%s0 + $0x58] sm:$0xff]
  %v65 = vld [vmem:[%s0 + $0x60] sm:$0xff]
  %v66 = vld [vmem:[%s0 + $0x68] sm:$0xff]
  %v67 = vld [vmem:[%s0 + $0x70] sm:$0xff]
  %v68 = vld [vmem:[%s0 + $0x78] sm:$0xff]
  %70 = vset.pattern.permute.xlu0 0
  %71 = vperm.xlu0 %70, %v20
  %v72 = vpop.permute.xlu0 %71
  %75 = vset.pattern.permute.xlu0 0
  %76 = vperm.xlu0 %75, %v21
  %v77 = vpop.permute.xlu0 %76
  %80 = vset.pattern.permute.xlu0 0
  %81 = vperm.xlu0 %80, %v22
  %v82 = vpop.permute.xlu0 %81
  %85 = vset.pattern.permute.xlu0 0
  %86 = vperm.xlu0 %85, %v23
  %v87 = vpop.permute.xlu0 %86
  %90 = vset.pattern.permute.xlu0 0
  %91 = vperm.xlu0 %90, %v24
  %v92 = vpop.permute.xlu0 %91
  %95 = vset.pattern.permute.xlu0 0
  %96 = vperm.xlu0 %95, %v25
  %v97 = vpop.permute.xlu0 %96
  %100 = vset.pattern.permute.xlu0 0
  %101 = vperm.xlu0 %100, %v26
  %v102 = vpop.permute.xlu0 %101
  %105 = vset.pattern.permute.xlu0 0
  %106 = vperm.xlu0 %105, %v27
  %v107 = vpop.permute.xlu0 %106
  %110 = vset.pattern.permute.xlu0 0
  %111 = vperm.xlu0 %110, %v28
  %v112 = vpop.permute.xlu0 %111
  %115 = vset.pattern.permute.xlu0 0
  %116 = vperm.xlu0 %115, %v29
  %v117 = vpop.permute.xlu0 %116
  %120 = vset.pattern.permute.xlu0 0
  %121 = vperm.xlu0 %120, %v30
  %v122 = vpop.permute.xlu0 %121
  %125 = vset.pattern.permute.xlu0 0
  %126 = vperm.xlu0 %125, %v31
  %v127 = vpop.permute.xlu0 %126
  %130 = vset.pattern.permute.xlu0 0
  %131 = vperm.xlu0 %130, %v32
  %v132 = vpop.permute.xlu0 %131
  %135 = vset.pattern.permute.xlu0 0
  %136 = vperm.xlu0 %135, %v33
  %v137 = vpop.permute.xlu0 %136
  %140 = vset.pattern.permute.xlu0 0
  %141 = vperm.xlu0 %140, %v34
  %v142 = vpop.permute.xlu0 %141
  %145 = vset.pattern.permute.xlu0 0
  %146 = vperm.xlu0 %145, %v35
  %v147 = vpop.permute.xlu0 %146
  %vm149 = vcmask 31744
  %v151 = vsel %vm149, %v37, 0
  %v154 = vsel %vm149, %v38, 0
  %v157 = vsel %vm149, %v39, 0
  %v160 = vsel %vm149, %v40, 0
  %v163 = vsel %vm149, %v41, 0
  %v166 = vsel %vm149, %v42, 0
  %v169 = vsel %vm149, %v43, 0
  %v172 = vsel %vm149, %v44, 0
  %v175 = vsel %vm149, %v45, 0
  %v178 = vsel %vm149, %v46, 0
  %v181 = vsel %vm149, %v47, 0
  %v184 = vsel %vm149, %v48, 0
  %v187 = vsel %vm149, %v49, 0
  %v190 = vsel %vm149, %v50, 0
  %v193 = vsel %vm149, %v51, 0
  %v196 = vsel %vm149, %v52, 0
  %v199 = vsel %vm149, %v53, 0
  %v202 = vsel %vm149, %v54, 0
  %v205 = vsel %vm149, %v55, 0
  %v208 = vsel %vm149, %v56, 0
  %v211 = vsel %vm149, %v57, 0
  %v214 = vsel %vm149, %v58, 0
  %v217 = vsel %vm149, %v59, 0
  %v220 = vsel %vm149, %v60, 0
  %v223 = vsel %vm149, %v61, 0
  %v226 = vsel %vm149, %v62, 0
  %v229 = vsel %vm149, %v63, 0
  %v232 = vsel %vm149, %v64, 0
  %v235 = vsel %vm149, %v65, 0
  %v238 = vsel %vm149, %v66, 0
  %v241 = vsel %vm149, %v67, 0
  %v244 = vsel %vm149, %v68, 0
  %246 = vmatpush.xpose.msra.mxu0 %v244
  %247 = vmatpush.xpose.msra.mxu0 %v241
  %248 = vmatpush.xpose.msra.mxu0 %v238
  %249 = vmatpush.xpose.msra.mxu0 %v235
  %250 = vmatpush.xpose.msra.mxu0 %v232
  %251 = vmatpush.xpose.msra.mxu0 %v229
  %252 = vmatpush.xpose.msra.mxu0 %v226
  %253 = vmatpush.xpose.msra.mxu0 %v223
  %254 = vmatpush.xpose.msra.mxu0 %v220
  %255 = vmatpush.xpose.msra.mxu0 %v217
  %256 = vmatpush.xpose.msra.mxu0 %v214
  %257 = vmatpush.xpose.msra.mxu0 %v211
  %258 = vmatpush.xpose.msra.mxu0 %v208
  %259 = vmatpush.xpose.msra.mxu0 %v205
  %260 = vmatpush.xpose.msra.mxu0 %v202
  %261 = vmatpush.xpose.msra.mxu0 %v199
  %262 = vmatmul.f32.gmra.mxu0 %v151
  %v263 = vpop.f32.mrf.mxu0
  %v264 = vadd.f32 %v72, %v263
  %265 = vmatmul.f32.gmra.mxu0 %v154
  %v266 = vpop.f32.mrf.mxu0
  %v267 = vadd.f32 %v77, %v266
  %268 = vmatmul.f32.gmra.mxu0 %v157
  %v269 = vpop.f32.mrf.mxu0
  %v270 = vadd.f32 %v82, %v269
  %271 = vmatmul.f32.gmra.mxu0 %v160
  %v272 = vpop.f32.mrf.mxu0
  %v273 = vadd.f32 %v87, %v272
  %274 = vmatmul.f32.gmra.mxu0 %v163
  %v275 = vpop.f32.mrf.mxu0
  %v276 = vadd.f32 %v92, %v275
  %277 = vmatmul.f32.gmra.mxu0 %v166
  %v278 = vpop.f32.mrf.mxu0
  %v279 = vadd.f32 %v97, %v278
  %280 = vmatmul.f32.gmra.mxu0 %v169
  %v281 = vpop.f32.mrf.mxu0
  %v282 = vadd.f32 %v102, %v281
  %283 = vmatmul.f32.gmra.mxu0 %v172
  %v284 = vpop.f32.mrf.mxu0
  %v285 = vadd.f32 %v107, %v284
  %286 = vmatmul.f32.gmra.mxu0 %v175
  %v287 = vpop.f32.mrf.mxu0
  %v288 = vadd.f32 %v112, %v287
  %289 = vmatmul.f32.gmra.mxu0 %v178
  %v290 = vpop.f32.mrf.mxu0
  %v291 = vadd.f32 %v117, %v290
  %292 = vmatmul.f32.gmra.mxu0 %v181
  %v293 = vpop.f32.mrf.mxu0
  %v294 = vadd.f32 %v122, %v293
  %295 = vmatmul.f32.gmra.mxu0 %v184
  %v296 = vpop.f32.mrf.mxu0
  %v297 = vadd.f32 %v127, %v296
  %298 = vmatmul.f32.gmra.mxu0 %v187
  %v299 = vpop.f32.mrf.mxu0
  %v300 = vadd.f32 %v132, %v299
  %301 = vmatmul.f32.gmra.mxu0 %v190
  %v302 = vpop.f32.mrf.mxu0
  %v303 = vadd.f32 %v137, %v302
  %304 = vmatmul.f32.gmra.mxu0 %v193
  %v305 = vpop.f32.mrf.mxu0
  %v306 = vadd.f32 %v142, %v305
  %307 = vmatmul.f32.gmra.mxu0 %v196
  %v308 = vpop.f32.mrf.mxu0
  %v309 = vadd.f32 %v147, %v308
  %310 = vdwg.mxu0
  %v311 = vmax.f32 %v264, 0.0
  %v312 = vmax.f32 %v267, 0.0
  %v313 = vmax.f32 %v270, 0.0
  %v314 = vmax.f32 %v273, 0.0
  %v315 = vmax.f32 %v276, 0.0
  %v316 = vmax.f32 %v279, 0.0
  %v317 = vmax.f32 %v282, 0.0
  %v318 = vmax.f32 %v285, 0.0
  %v319 = vmax.f32 %v288, 0.0
  %v320 = vmax.f32 %v291, 0.0
  %v321 = vmax.f32 %v294, 0.0
  %v322 = vmax.f32 %v297, 0.0
  %v323 = vmax.f32 %v300, 0.0
  %v324 = vmax.f32 %v303, 0.0
  %v325 = vmax.f32 %v306, 0.0
  %v326 = vmax.f32 %v309, 0.0
  %v327 = vld [vmem:[%s2] sm:$0xf]
  %v328 = vld [vmem:[%s2 + $0x4] sm:$0xf]
  %v329 = vld [vmem:[%s2 + $0x8] sm:$0xf]
  %v330 = vld [vmem:[%s2 + $0xc] sm:$0xf]
  %v331 = vld [vmem:[%s2 + $0x10] sm:$0xf]
  %v332 = vld [vmem:[%s2 + $0x14] sm:$0xf]
  %v333 = vld [vmem:[%s2 + $0x18] sm:$0xf]
  %v334 = vld [vmem:[%s2 + $0x1c] sm:$0xf]
  %v335 = vld [vmem:[%s2 + $0x20] sm:$0xf]
  %v336 = vld [vmem:[%s2 + $0x24] sm:$0xf]
  %v337 = vld [vmem:[%s2 + $0x28] sm:$0xf]
  %v338 = vld [vmem:[%s2 + $0x2c] sm:$0xf]
  %v339 = vld [vmem:[%s2 + $0x30] sm:$0xf]
  %v340 = vld [vmem:[%s2 + $0x34] sm:$0xf]
  %v341 = vld [vmem:[%s2 + $0x38] sm:$0xf]
  %v342 = vld [vmem:[%s2 + $0x3c] sm:$0xf]
  %v343 = vpack.c.bf16 %v312, %v311
  %v344 = vpack.c.bf16 %v314, %v313
  %v345 = vpack.c.bf16 %v316, %v315
  %v346 = vpack.c.bf16 %v318, %v317
  %v347 = vpack.c.bf16 %v320, %v319
  %v348 = vpack.c.bf16 %v322, %v321
  %v349 = vpack.c.bf16 %v324, %v323
  %v350 = vpack.c.bf16 %v326, %v325
  %351 = vset.pattern.permute.xlu0 1
  %352 = vperm.xlu0 %351, %v20
  %v353 = vpop.permute.xlu0 %352
  %355 = vset.pattern.permute.xlu0 1
  %356 = vperm.xlu0 %355, %v21
  %v357 = vpop.permute.xlu0 %356
  %359 = vset.pattern.permute.xlu0 1
  %360 = vperm.xlu0 %359, %v22
  %v361 = vpop.permute.xlu0 %360
  %363 = vset.pattern.permute.xlu0 1
  %364 = vperm.xlu0 %363, %v23
  %v365 = vpop.permute.xlu0 %364
  %367 = vset.pattern.permute.xlu0 1
  %368 = vperm.xlu0 %367, %v24
  %v369 = vpop.permute.xlu0 %368
  %371 = vset.pattern.permute.xlu0 1
  %372 = vperm.xlu0 %371, %v25
  %v373 = vpop.permute.xlu0 %372
  %375 = vset.pattern.permute.xlu0 1
  %376 = vperm.xlu0 %375, %v26
  %v377 = vpop.permute.xlu0 %376
  %379 = vset.pattern.permute.xlu0 1
  %380 = vperm.xlu0 %379, %v27
  %v381 = vpop.permute.xlu0 %380
  %383 = vset.pattern.permute.xlu0 1
  %384 = vperm.xlu0 %383, %v28
  %v385 = vpop.permute.xlu0 %384
  %387 = vset.pattern.permute.xlu0 1
  %388 = vperm.xlu0 %387, %v29
  %v389 = vpop.permute.xlu0 %388
  %391 = vset.pattern.permute.xlu0 1
  %392 = vperm.xlu0 %391, %v30
  %v393 = vpop.permute.xlu0 %392
  %395 = vset.pattern.permute.xlu0 1
  %396 = vperm.xlu0 %395, %v31
  %v397 = vpop.permute.xlu0 %396
  %399 = vset.pattern.permute.xlu0 1
  %400 = vperm.xlu0 %399, %v32
  %v401 = vpop.permute.xlu0 %400
  %403 = vset.pattern.permute.xlu0 1
  %404 = vperm.xlu0 %403, %v33
  %v405 = vpop.permute.xlu0 %404
  %407 = vset.pattern.permute.xlu0 1
  %408 = vperm.xlu0 %407, %v34
  %v409 = vpop.permute.xlu0 %408
  %411 = vset.pattern.permute.xlu0 1
  %412 = vperm.xlu0 %411, %v35
  %v413 = vpop.permute.xlu0 %412
  %v431 = vunpack.c.l.b16 %v327
  %v432 = vunpack.c.l.b16 %v328
  %v433 = vunpack.c.l.b16 %v329
  %v434 = vunpack.c.l.b16 %v330
  %v435 = vunpack.c.l.b16 %v331
  %v436 = vunpack.c.l.b16 %v332
  %v437 = vunpack.c.l.b16 %v333
  %v438 = vunpack.c.l.b16 %v334
  %v439 = vunpack.c.l.b16 %v335
  %v440 = vunpack.c.l.b16 %v336
  %v441 = vunpack.c.l.b16 %v337
  %v442 = vunpack.c.l.b16 %v338
  %v443 = vunpack.c.l.b16 %v339
  %v444 = vunpack.c.l.b16 %v340
  %v445 = vunpack.c.l.b16 %v341
  %v446 = vunpack.c.l.b16 %v342
  %v447 = vpack.c.b16 %v432, %v431
  %v448 = vpack.c.b16 %v434, %v433
  %v449 = vpack.c.b16 %v436, %v435
  %v450 = vpack.c.b16 %v438, %v437
  %v451 = vpack.c.b16 %v440, %v439
  %v452 = vpack.c.b16 %v442, %v441
  %v453 = vpack.c.b16 %v444, %v443
  %v454 = vpack.c.b16 %v446, %v445
  %463 = vmatpush.bf16.msra.mxu0 %v350
  %464 = vmatpush.bf16.msra.mxu0 %v349
  %465 = vmatpush.bf16.msra.mxu0 %v348
  %466 = vmatpush.bf16.msra.mxu0 %v347
  %467 = vmatpush.bf16.msra.mxu0 %v346
  %468 = vmatpush.bf16.msra.mxu0 %v345
  %469 = vmatpush.bf16.msra.mxu0 %v344
  %470 = vmatpush.bf16.msra.mxu0 %v343
  %471 = vmatmul.bf16.gmra.mxu0 %v447
  %v472 = vpop.f32.mrf.mxu0
  %v473 = vadd.f32 %v353, %v472
  %v474 = vpop.f32.mrf.mxu0
  %v475 = vadd.f32 %v357, %v474
  %476 = vmatmul.bf16.gmra.mxu0 %v448
  %v477 = vpop.f32.mrf.mxu0
  %v478 = vadd.f32 %v361, %v477
  %v479 = vpop.f32.mrf.mxu0
  %v480 = vadd.f32 %v365, %v479
  %481 = vmatmul.bf16.gmra.mxu0 %v449
  %v482 = vpop.f32.mrf.mxu0
  %v483 = vadd.f32 %v369, %v482
  %v484 = vpop.f32.mrf.mxu0
  %v485 = vadd.f32 %v373, %v484
  %486 = vmatmul.bf16.gmra.mxu0 %v450
  %v487 = vpop.f32.mrf.mxu0
  %v488 = vadd.f32 %v377, %v487
  %v489 = vpop.f32.mrf.mxu0
  %v490 = vadd.f32 %v381, %v489
  %491 = vmatmul.bf16.gmra.mxu0 %v451
  %v492 = vpop.f32.mrf.mxu0
  %v493 = vadd.f32 %v385, %v492
  %v494 = vpop.f32.mrf.mxu0
  %v495 = vadd.f32 %v389, %v494
  %496 = vmatmul.bf16.gmra.mxu0 %v452
  %v497 = vpop.f32.mrf.mxu0
  %v498 = vadd.f32 %v393, %v497
  %v499 = vpop.f32.mrf.mxu0
  %v500 = vadd.f32 %v397, %v499
  %501 = vmatmul.bf16.gmra.mxu0 %v453
  %v502 = vpop.f32.mrf.mxu0
  %v503 = vadd.f32 %v401, %v502
  %v504 = vpop.f32.mrf.mxu0
  %v505 = vadd.f32 %v405, %v504
  %506 = vmatmul.bf16.gmra.mxu0 %v454
  %v507 = vpop.f32.mrf.mxu0
  %v508 = vadd.f32 %v409, %v507
  %v509 = vpop.f32.mrf.mxu0
  %v510 = vadd.f32 %v413, %v509
  %511 = vdwg.mxu0
  %v512 = vmax.f32 %v473, 0.0
  %v513 = vmax.f32 %v475, 0.0
  %v514 = vmax.f32 %v478, 0.0
  %v515 = vmax.f32 %v480, 0.0
  %v516 = vmax.f32 %v483, 0.0
  %v517 = vmax.f32 %v485, 0.0
  %v518 = vmax.f32 %v488, 0.0
  %v519 = vmax.f32 %v490, 0.0
  %v520 = vmax.f32 %v493, 0.0
  %v521 = vmax.f32 %v495, 0.0
  %v522 = vmax.f32 %v498, 0.0
  %v523 = vmax.f32 %v500, 0.0
  %v524 = vmax.f32 %v503, 0.0
  %v525 = vmax.f32 %v505, 0.0
  %v526 = vmax.f32 %v508, 0.0
  %v527 = vmax.f32 %v510, 0.0
  %v528 = vld [vmem:[%s3] sm:$0x1]
  %530 = vset.pattern.permute.xlu0 2
  %531 = vperm.xlu0 %530, %v36
  %v532 = vpop.permute.xlu0 %531
  %534 = vmatpush.msra.mxu0 %v527
  %535 = vmatpush.msra.mxu0 %v526
  %536 = vmatpush.msra.mxu0 %v525
  %537 = vmatpush.msra.mxu0 %v524
  %538 = vmatpush.msra.mxu0 %v523
  %539 = vmatpush.msra.mxu0 %v522
  %540 = vmatpush.msra.mxu0 %v521
  %541 = vmatpush.msra.mxu0 %v520
  %542 = vmatpush.msra.mxu0 %v519
  %543 = vmatpush.msra.mxu0 %v518
  %544 = vmatpush.msra.mxu0 %v517
  %545 = vmatpush.msra.mxu0 %v516
  %546 = vmatpush.msra.mxu0 %v515
  %547 = vmatpush.msra.mxu0 %v514
  %548 = vmatpush.msra.mxu0 %v513
  %549 = vmatpush.msra.mxu0 %v512
  %550 = vmatmul.f32.gmra.mxu0 %v528
  %v551 = vpop.f32.mrf.mxu0
  %v552 = vadd.f32 %v532, %v551
  %553 = vdwg.mxu0
  %554 = vst [vmem:[%s5] sm:$0x1] %v552
  // Predicated region
  $region22: #{value_model_forward.1} parent=0 // pred_check
    _
  $region23: #{value_model_forward.1} parent=0 // pred_check_branch
    %556 = sbr.rel (0) target = $region25
  $region24: #{value_model_forward.1} parent=0 // pred_region
    _
  $region25: #{value_model_forward.1} parent=0 // pred_fallthru
    _
  // Predicated region
  $region26: #{value_model_forward.1} parent=0 // pred_check
    _
  $region27: #{value_model_forward.1} parent=0 // pred_check_branch
    %558 = sbr.rel (0) target = $region29
  $region28: #{value_model_forward.1} parent=0 // pred_region
    _
  $region29: #{value_model_forward.1} parent=0 // pred_fallthru
    _

</llo_original>
